<compile_context>
chip_gen: v5e
topology: v5e:2x2
jax: 0.10.0
libtpu: 0.0.40
codegen_flags: <defaults>
</compile_context>

<pallas_src>
import jax
import jax.numpy as jnp
from jax.experimental import pallas as pl
from jax.experimental.pallas import tpu as pltpu


# ----------------------------------------------------------------------------
# Zero-cost identity: exact module semantics.
# ----------------------------------------------------------------------------
def identity(x, **kwargs):
    """Identity forward: literally `return x` (no copy, no kernel)."""
    return x


# ----------------------------------------------------------------------------
# Primary materializing copy: single HBM->HBM DMA (no VMEM staging).
# ----------------------------------------------------------------------------
def _dma_copy_kernel(x_hbm_ref, o_hbm_ref, dma_sem):
    # One DMA descriptor copies the entire array HBM->HBM; the TensorCore only
    # issues the descriptor and waits on the completion semaphore.
    cp = pltpu.make_async_copy(x_hbm_ref, o_hbm_ref, dma_sem)
    cp.start()
    cp.wait()


def identity_copy(x):
    """Materialized identity (fresh output buffer) via a single HBM->HBM DMA."""
    if x.size == 0:
        return jnp.zeros(x.shape, x.dtype)
    return pl.pallas_call(
        _dma_copy_kernel,
        out_shape=jax.ShapeDtypeStruct(x.shape, x.dtype),
        in_specs=[pl.BlockSpec(memory_space=pl.ANY)],   # leave input in HBM
        out_specs=pl.BlockSpec(memory_space=pl.ANY),    # write output in HBM
        scratch_shapes=[pltpu.SemaphoreType.DMA],       # DMA completion sem
        compiler_params=pltpu.CompilerParams(has_side_effects=True),
    )(x)


# ----------------------------------------------------------------------------
# Reference BlockSpec-pipelined copy (VMEM-staged), hardened per review.
# ----------------------------------------------------------------------------
def _vmem_copy_kernel(x_ref, o_ref):
    o_ref[...] = x_ref[...]


def _choose_2d_view(total):
    """Lane-dense (rows, cols) view: cols a large multiple of 128, or None."""
    for cols in (2048, 1024, 512, 256, 128):
        if total % cols == 0:
            return total // cols, cols
    return None  # non-128-divisible: handled by the DMA path instead


def _budget_and_vmem_limit():
    """Generation-aware per-buffer tile budget + explicit scoped-VMEM limit."""
    try:
        cap = int(pltpu.get_tpu_info().vmem_capacity_bytes)
    except Exception:
        cap = 64 * 1024 * 1024  # be conservative (v7x-sized) if query fails
    if cap >= 100 * 1024 * 1024:
        # v5e / v6e: 128 MiB physical VMEM -> bigger tiles, fewer grid steps.
        return 8 * 1024 * 1024, 64 * 1024 * 1024
    # v7x: 64 MiB physical VMEM -> cap per-buffer tiles at ~4 MiB
    # (2 x (in+out) double buffers = 16 MiB, well under the 32 MiB limit).
    return 4 * 1024 * 1024, 32 * 1024 * 1024


def _pick_tile_rows(rows, cols, itemsize, budget_bytes):
    """Largest sublane-aligned tile within budget, preferring an even divisor."""
    # Dtype-aware sublane alignment: packed sub-32-bit rows travel in groups.
    align = max(8, 32 // max(1, itemsize))
    max_tr = max(1, budget_bytes // (cols * itemsize))
    if max_tr >= rows:
        return rows  # full extent: always a legal block shape
    tr = max(align, (max_tr // align) * align)
    # Prefer a tile_rows that divides rows evenly (avoids one masked trailing
    # partial block) if such a value exists within a few percent of the budget.
    lo = max(align, tr - 16 * align)
    for cand in range(tr, lo - 1, -align):
        if rows % cand == 0:
            return cand
    return tr


def identity_copy_pipelined(x):
    """Materialized identity as a lane-dense, double-buffered VMEM-staged copy."""
    if x.size == 0:
        return jnp.zeros(x.shape, x.dtype)

    orig_shape, orig_dtype = x.shape, x.dtype
    view = _choose_2d_view(int(x.size))
    if view is None:
        # Non-128-divisible element count: the HBM->HBM DMA path handles any
        # shape without masked stores or VMEM blowup.
        return identity_copy(x)

    rows, cols = view
    itemsize = jnp.dtype(orig_dtype).itemsize
    budget, vmem_limit = _budget_and_vmem_limit()
    tile_rows = _pick_tile_rows(rows, cols, itemsize, budget)

    x2 = x.reshape(rows, cols)
    grid = (pl.cdiv(rows, tile_rows),)

    out2 = pl.pallas_call(
        _vmem_copy_kernel,
        out_shape=jax.ShapeDtypeStruct((rows, cols), orig_dtype),
        grid_spec=pl.GridSpec(
            grid=grid,
            in_specs=[pl.BlockSpec((tile_rows, cols), lambda i: (i, 0))],
            out_specs=pl.BlockSpec((tile_rows, cols), lambda i: (i, 0)),
        ),
        compiler_params=pltpu.CompilerParams(
            # plain parallel vs arbitrary is ~zero delta; real 2-TC sharding on
            # v7x would need CORE_PARALLEL + an explicit per-core grid axis,
            # which is moot for a DMA-bound copy sharing HBM bandwidth.
            dimension_semantics=("parallel",),
            vmem_limit_bytes=vmem_limit,
        ),
    )(x2)

    return out2.reshape(orig_shape)


# ----------------------------------------------------------------------------
# Demo / self-test.
# ----------------------------------------------------------------------------
if __name__ == "__main__":
    key = jax.random.PRNGKey(0)
    # Small NCHW input consistent with a conv-net identity block.
    x = jax.random.normal(key, (2, 4, 16, 16), dtype=jnp.float32)

    # Zero-cost path: the module's forward is literally `return x`.
    y0 = identity(x)
    assert y0 is x

    # Primary path: single HBM->HBM DMA copy.
    y = identity_copy(x)
    jax.block_until_ready(y)
    assert y.shape == x.shape and y.dtype == x.dtype
    assert bool(jnp.all(y == x)), "DMA identity output differs from input"

    # Reference pipelined path (lane-dense tiled VMEM-staged copy).
    y2 = identity_copy_pipelined(x)
    jax.block_until_ready(y2)
    assert y2.shape == x.shape and y2.dtype == x.dtype
    assert bool(jnp.all(y2 == x)), "pipelined identity output differs from input"

    # Sub-32-bit dtype (bf16): dtype-aware sublane alignment path.
    x_bf16 = jax.random.normal(jax.random.PRNGKey(1), (8, 32, 128)).astype(jnp.bfloat16)
    y_bf16 = identity_copy_pipelined(x_bf16)
    jax.block_until_ready(y_bf16)
    assert bool(jnp.all(y_bf16 == x_bf16))

    # Awkward (non-128-divisible) size: handled cleanly by the DMA path.
    x_odd = jax.random.normal(key, (3, 5, 7), dtype=jnp.float32)
    y_odd = identity_copy(x_odd)
    y_odd2 = identity_copy_pipelined(x_odd)   # falls back to the DMA path
    jax.block_until_ready((y_odd, y_odd2))
    assert y_odd.shape == x_odd.shape and bool(jnp.all(y_odd == x_odd))
    assert bool(jnp.all(y_odd2 == x_odd))

    print("KERNEL_OK")
</pallas_src>

<mosaic_0001>
module attributes {stable_mosaic.version = 11 : i64} {
  func.func @_dma_copy_kernel(%arg0: memref<2x4x16x16xf32, #tpu.memory_space<any>>, %arg1: memref<2x4x16x16xf32, #tpu.memory_space<any>>, %arg2: memref<!tpu.dma_semaphore, #tpu.memory_space<semaphore_mem>>) attributes {dimension_semantics = [], scalar_prefetch = 0 : i64, scratch_operands = 1 : i64, tpu.core_type = #tpu.core_type<tc>} {
    tpu.enqueue_dma source(%arg0 : memref<2x4x16x16xf32, #tpu.memory_space<any>>) target(%arg1 : memref<2x4x16x16xf32, #tpu.memory_space<any>>) target_semaphore(%arg2 : memref<!tpu.dma_semaphore, #tpu.memory_space<semaphore_mem>>)
    tpu.wait_dma2 semaphore(%arg2 : memref<!tpu.dma_semaphore, #tpu.memory_space<semaphore_mem>>) src(%arg0 : memref<2x4x16x16xf32, #tpu.memory_space<any>>) dst(%arg1 : memref<2x4x16x16xf32, #tpu.memory_space<any>>)
    return
  }
}

</mosaic_0001>

<llo_original>
// kernel: tpu_custom_call.1
$region0: #{tpu_custom_call.1}
  #allocation0 [shape = 'u32[]', space=smem, size = 0x4, offset = 0x4, fixed_abs, tag = 'smem constant byte address 0x4 - core index']
  #allocation1 [shape = 'u32[72,128]{1,0:T(1,128)}', space=vmem, size = 0x9000, scoped, tag = 'internal scratch']
  #allocation2 [shape = 's32[1]{0}', space=sflag, size = 0x4, scoped, tag = 'scratch operand']
  #allocation3 [shape = 's32[]', space=sflag, size = 0x4, offset = 0, fixed_abs, tag = 'sflag constant byte address 0x0 - dummy sync flag']
  #allocation4 [shape = 'u32[0]{0}', space=smem, size = 0, offset = 0, fixed_abs, tag = 'smem constant byte address 0x0 - null']
  %s0 = inlined_call_operand.hbm [shape: f32[2,4,16,16], index: 0, kind: input, shape index: {}]
  %s1 = inlined_call_operand.hbm [shape: f32[2,4,16,16], index: 1, kind: output, shape index: {}]
  %s2 = sld [smem:[#allocation0]]
  $region2: #{tpu_custom_call.1} parent=0
    _
  %s4 = ssub.s32 1, %s2
  %s5 = scalar_select 0, %s4, %s2
  %s7 = sshll.u32 1, 14
  %s8 = sxor.u32 4294967295, %s7
  %s10 = sshll.u32 %s0, 4
  %s11 = int_to_ptr.hbm [resolvable:$true] %s10
  %s12 = sshll.u32 %s1, 4
  %s13 = int_to_ptr.hbm [resolvable:$true] %s12
  %16 = dma.general %s11, 2048, %s13, [#allocation2], [#allocation3], [#allocation4], 0, 0
  %s17 = smul.u32 2, 4
  %s18 = smul.u32 %s17, 16
  %s19 = smul.u32 %s18, 1
  %s20 = sshll.u32 %s19, 4
  %21 = dma.done [#allocation2], %s20
  %22 = vsyncmov [#allocation2]
  %s23 = vpop.sfrf %22
  %p24 = scmp.eq.s32.totalorder %s23, 0
  %p25 = pneg %p24
  %27 = shalt.err (%p25)

</llo_original>
